<compile_context>
chip_gen: v6e
topology: v6e:2x2x1
jax: 0.10.0
libtpu: 0.0.40
codegen_flags: <defaults>
</compile_context>

<pallas_src>
import jax
import jax.numpy as jnp
from jax.experimental import pallas as pl
from jax.experimental.pallas import tpu as pltpu


def _glu_kernel(a_ref, g_ref, o_ref):
    # Elementwise hot path: sigmoid on the EUP (in f32 for bf16 / v5e numerics),
    # multiply on the VPU, cast back to the output dtype (no-op for f32).
    a = a_ref[...].astype(jnp.float32)
    g = g_ref[...].astype(jnp.float32)
    o_ref[...] = (a * jax.nn.sigmoid(g)).astype(o_ref.dtype)


def _largest_divisor_leq(n: int, cap: int) -> int:
    cap = max(1, min(cap, n))
    for d in range(cap, 0, -1):
        if n % d == 0:
            return d
    return 1


def _pick_lane_extent(m: int, sub: int) -> int:
    """Lane extent L (a divisor of m): multiple of 128, <= 2048, preferring
    m // L >= sub so at least `sub` rows pack onto the sublane axis."""
    if m % 128 != 0:
        return m  # rare fallback: full-extent lane dim (legal, just less packed)
    largest = None
    for k in range(min(2048, m) // 128, 0, -1):
        cand = 128 * k
        if m % cand == 0:
            if largest is None:
                largest = cand
            if m // cand >= sub:
                return cand
    return largest  # m % 128 == 0, so at least 128 always divides m


def glu(x: jax.Array, dim: int) -> jax.Array:
    """GLU along `dim`, implemented with a Pallas elementwise kernel."""
    dim = dim % x.ndim
    C = x.shape[dim]
    assert C % 2 == 0, "GLU split dim must be even"
    half = C // 2

    outer = 1
    for s in x.shape[:dim]:
        outer *= s
    inner = 1
    for s in x.shape[dim + 1:]:
        inner *= s

    itemsize = jnp.dtype(x.dtype).itemsize
    sub = max(8, 32 // itemsize)                   # sublane pack: 8 f32 / 16 bf16
    target_elems = (2 * 1024 * 1024) // itemsize   # ~2 MiB per block
                                                   # (2 in + 1 out, double-buffered
                                                   #  => ~12 MiB VMEM resident)

    M = half * inner                               # elems in one (outer, half) slab
    L = _pick_lane_extent(M, sub)                  # lane extent (divides M)
    R = M // L                                     # sublane extent

    # Lane tile: full L in the common path; cap at 2048 (multiple of 128, ragged
    # tail masked by Pallas) in the non-128-divisible fallback.
    tile_l = L if L <= 2048 else 2048

    desired_r = max(1, target_elems // tile_l)
    if R <= desired_r:
        tile_r = R                                 # full extent -> always legal
    else:
        tile_r = min(R, max(sub, (desired_r // sub) * sub))  # multiple of `sub`

    desired_o = max(1, target_elems // (tile_r * tile_l))
    tile_o = _largest_divisor_leq(outer, desired_o)

    xr = x.reshape(outer, 2, R, L)                 # free reshape, no data movement
    grid = (outer // tile_o, pl.cdiv(R, tile_r), pl.cdiv(L, tile_l))

    in_block = (tile_o, None, tile_r, tile_l)      # None squeezes the a/g selector
    out = pl.pallas_call(
        _glu_kernel,
        out_shape=jax.ShapeDtypeStruct((outer, R, L), x.dtype),
        grid=grid,
        in_specs=[
            pl.BlockSpec(in_block, lambda o, r, l: (o, 0, r, l)),  # "outputs" half
            pl.BlockSpec(in_block, lambda o, r, l: (o, 1, r, l)),  # "gate" half
        ],
        out_specs=pl.BlockSpec((tile_o, tile_r, tile_l), lambda o, r, l: (o, r, l)),
        compiler_params=pltpu.CompilerParams(
            dimension_semantics=("parallel", "parallel", "parallel"),
            vmem_limit_bytes=32 * 1024 * 1024,
        ),
    )(xr, xr)  # same array passed twice; BlockSpecs select the two halves

    return out.reshape(x.shape[:dim] + (half,) + x.shape[dim + 1:])


if __name__ == "__main__":
    key = jax.random.PRNGKey(0)
    # NCHW input, GLU over the channel dim (dim=1), as a gated conv block would.
    x = jax.random.normal(key, (2, 4, 16, 16), dtype=jnp.float32)

    y = jax.block_until_ready(glu(x, dim=1))

    # Reference (pure JAX) check of PyTorch chunk + sigmoid-gate semantics.
    a, g = jnp.split(x, 2, axis=1)
    ref = a * jax.nn.sigmoid(g)

    assert y.shape == ref.shape == (2, 2, 16, 16)
    assert jnp.allclose(y, ref, atol=1e-6, rtol=1e-6)

    print("KERNEL_OK")
</pallas_src>

<mosaic_0001>
module attributes {stable_mosaic.version = 11 : i64} {
  func.func @_glu_kernel(%arg0: i32, %arg1: i32, %arg2: i32, %arg3: memref<2x1x1x512xf32, #tpu.memory_space<vmem>>, %arg4: memref<2x1x1x512xf32, #tpu.memory_space<vmem>>, %arg5: memref<2x1x512xf32, #tpu.memory_space<vmem>>) attributes {dimension_semantics = [#tpu.dimension_semantics<parallel>, #tpu.dimension_semantics<parallel>, #tpu.dimension_semantics<parallel>], iteration_bounds = array<i64: 1, 1, 1>, scalar_prefetch = 0 : i64, scratch_operands = 0 : i64, tpu.core_type = #tpu.core_type<tc>, window_params = [{transform_indices = @transform_0, window_bounds = array<i64: 2, 1, 1, 512>}, {transform_indices = @transform_1, window_bounds = array<i64: 2, 1, 1, 512>}, {transform_indices = @transform_2, window_bounds = array<i64: 2, 1, 512>}]} {
    %c0 = arith.constant 0 : index
    %c0_0 = arith.constant 0 : index
    %c0_1 = arith.constant 0 : index
    %c0_2 = arith.constant 0 : index
    %0 = vector.load %arg3[%c0, %c0_0, %c0_1, %c0_2] : memref<2x1x1x512xf32, #tpu.memory_space<vmem>>, vector<2x1x1x512xf32>
    %1 = vector.shape_cast %0 : vector<2x1x1x512xf32> to vector<2x1x512xf32>
    %c0_3 = arith.constant 0 : index
    %c0_4 = arith.constant 0 : index
    %c0_5 = arith.constant 0 : index
    %c0_6 = arith.constant 0 : index
    %2 = vector.load %arg4[%c0_3, %c0_4, %c0_5, %c0_6] : memref<2x1x1x512xf32, #tpu.memory_space<vmem>>, vector<2x1x1x512xf32>
    %3 = vector.shape_cast %2 : vector<2x1x1x512xf32> to vector<2x1x512xf32>
    %4 = arith.negf %3 : vector<2x1x512xf32>
    %5 = math.exp %4 : vector<2x1x512xf32>
    %cst = arith.constant 1.000000e+00 : f32
    %6 = vector.broadcast %cst : f32 to vector<2x1x512xf32>
    %7 = arith.addf %6, %5 : vector<2x1x512xf32>
    %8 = arith.divf %6, %7 : vector<2x1x512xf32>
    %9 = arith.mulf %1, %8 : vector<2x1x512xf32>
    %c0_7 = arith.constant 0 : index
    %c0_8 = arith.constant 0 : index
    %c0_9 = arith.constant 0 : index
    %10 = vector.load %arg5[%c0_7, %c0_8, %c0_9] : memref<2x1x512xf32, #tpu.memory_space<vmem>>, vector<2x1x512xf32>
    tpu.vector_store %arg5[%c0_7, %c0_8, %c0_9], %9 {strides = array<i32>} : memref<2x1x512xf32, #tpu.memory_space<vmem>>, vector<2x1x512xf32>,
    return
  }
  func.func @transform_0(%arg0: i32, %arg1: i32, %arg2: i32) -> (i32, i32, i32, i32) {
    %c0_i32 = arith.constant 0 : i32
    %c0_i32_0 = arith.constant 0 : i32
    return %arg0, %c0_i32, %arg1, %arg2 : i32, i32, i32, i32
  }
  func.func @transform_1(%arg0: i32, %arg1: i32, %arg2: i32) -> (i32, i32, i32, i32) {
    %c1_i32 = arith.constant 1 : i32
    %c0_i32 = arith.constant 0 : i32
    return %arg0, %c1_i32, %arg1, %arg2 : i32, i32, i32, i32
  }
  func.func @transform_2(%arg0: i32, %arg1: i32, %arg2: i32) -> (i32, i32, i32) {
    %c0_i32 = arith.constant 0 : i32
    return %arg0, %arg1, %arg2 : i32, i32, i32
  }
}

</mosaic_0001>

<llo_original>
// kernel: tpu_custom_call.1
$region0: #{tpu_custom_call.1}
  #allocation0 [shape = 'u32[]', space=smem, size = 0x4, offset = 0x4, fixed_abs, tag = 'smem constant byte address 0x4 - core index']
  #allocation1 [shape = 'u32[144,128]{1,0:T(1,128)}', space=vmem, size = 0x12000, scoped, tag = 'internal scratch']
  %s0 = inlined_call_operand.hbm [shape: f32[2,2,1,512], index: 0, kind: input, shape index: {}]
  %s1 = inlined_call_operand.hbm [shape: f32[2,2,1,512], index: 1, kind: input, shape index: {}]
  %s2 = inlined_call_operand.hbm [shape: f32[2,1,512], index: 2, kind: output, shape index: {}]
  %s3 = sld [smem:[#allocation0]]
  $region26: #{tpu_custom_call.1} parent=0
    _
  %s5 = ssub.s32 1, %s3
  %s6 = scalar_select 0, %s5, %s3
  $region1: #{tpu_custom_call.1} parent=0
    #allocation2 [shape = 'u8[4096]{0}', space=vmem, size = 0x1000, scoped, tag = 'input window, operand 0, single buffered']
    #allocation3 [shape = 's32[1]{0}', space=sflag, size = 0x4, scoped, tag = 'scoped memory for tpu_custom_call.1']
    #allocation4 [shape = 's32[1]{0}', space=sflag, size = 0x4, scoped, tag = 'scoped memory for tpu_custom_call.1']
    #allocation5 [shape = 'u8[4096]{0}', space=vmem, size = 0x1000, scoped, tag = 'input window, operand 1, single buffered']
    #allocation6 [shape = 's32[1]{0}', space=sflag, size = 0x4, scoped, tag = 'scoped memory for tpu_custom_call.1']
    #allocation7 [shape = 'u8[4096]{0}', space=vmem, size = 0x1000, scoped, tag = 'output window, operand 0, single buffered']
    %7 = vsyncpa [#allocation3], 0
    %8 = vsyncpa [#allocation6], 0
    %9 = vsyncpa [#allocation4], 0
    // Predicated region
    $region2: #{tpu_custom_call.1} parent=1 // pred_check
      _
    $region3: #{tpu_custom_call.1} parent=1 // pred_check_branch
      %11 = sbr.rel (0) target = $region5
    $region4: #{tpu_custom_call.1} parent=1 // pred_region
      %s13 = ssub.s32 128, 128
      %14 = vsyncadd [#allocation3], %s13
      %s15 = sshll.u32 [#allocation2], 4
      %s16 = int_to_ptr.vmem [resolvable:$true] %s15
      %21 = dma.hbm_to_vmem [thread:$0]  %s0, 128, %s16, [#allocation3], 128, 64, 4
    $region5: #{tpu_custom_call.1} parent=1 // pred_fallthru
      _
    // Predicated region
    $region6: #{tpu_custom_call.1} parent=1 // pred_check
      _
    $region7: #{tpu_custom_call.1} parent=1 // pred_check_branch
      %23 = sbr.rel (0) target = $region9
    $region8: #{tpu_custom_call.1} parent=1 // pred_region
      %s25 = ssub.s32 128, 128
      %26 = vsyncadd [#allocation6], %s25
      %s27 = scalar_lea.hbm %s1, 64
      %s28 = sshll.u32 [#allocation5], 4
      %s29 = int_to_ptr.vmem [resolvable:$true] %s28
      %34 = dma.hbm_to_vmem [thread:$0]  %s27, 128, %s29, [#allocation6], 128, 64, 4
    $region9: #{tpu_custom_call.1} parent=1 // pred_fallthru
      _
    // Predicated region
    $region10: #{tpu_custom_call.1} parent=1 // pred_check
      _
    $region11: #{tpu_custom_call.1} parent=1 // pred_check_branch
      %36 = sbr.rel (0) target = $region13
    $region12: #{tpu_custom_call.1} parent=1 // pred_region
      %37 = dma.done [#allocation3], 128
    $region13: #{tpu_custom_call.1} parent=1 // pred_fallthru
      _
    // Predicated region
    $region14: #{tpu_custom_call.1} parent=1 // pred_check
      _
    $region15: #{tpu_custom_call.1} parent=1 // pred_check_branch
      %39 = sbr.rel (0) target = $region17
    $region16: #{tpu_custom_call.1} parent=1 // pred_region
      %40 = dma.done [#allocation6], 128
    $region17: #{tpu_custom_call.1} parent=1 // pred_fallthru
      _
    %v41 = vld [vmem:[#allocation2] sm:$0xf]
    %v42 = vld [vmem:[#allocation2 + $0x4] sm:$0xf]
    %v43 = vld [vmem:[#allocation5] sm:$0xf]
    %v44 = vld [vmem:[#allocation5 + $0x4] sm:$0xf]
    %v45 = vxor.u32 %v43, 2147483648
    %v46 = vxor.u32 %v44, 2147483648
    %v47 = vmul.f32 %v45, 1.442695
    %v48 = vpow.pop %v47
    %v49 = vmul.f32 %v46, 1.442695
    %v50 = vpow.pop %v49
    %v51 = vadd.f32 %v48, 1.0
    %v52 = vadd.f32 %v50, 1.0
    %v53 = vrcp.pop %v51
    %v54 = vmul.f32 1.0, %v53
    %v55 = vrcp.pop %v52
    %v56 = vmul.f32 1.0, %v55
    %v57 = vmul.f32 %v41, %v54
    %v58 = vmul.f32 %v42, %v56
    %v59 = vlaneseq
    %vm60 = vcmp.ge.s32.totalorder %v59, 0
    %vm61 = vcmp.lt.s32.totalorder %v59, 512
    %vm62 = vmand %vm60, %vm61
    %63 = vst.msk [vmem:[#allocation7] sm:$0xf] %vm62, %v57
    %64 = vst.msk [vmem:[#allocation7 + $0x4] sm:$0xf] %vm62, %v58
    // Predicated region
    $region18: #{tpu_custom_call.1} parent=1 // pred_check
      _
    $region19: #{tpu_custom_call.1} parent=1 // pred_check_branch
      %66 = sbr.rel (0) target = $region21
    $region20: #{tpu_custom_call.1} parent=1 // pred_region
      %s68 = ssub.s32 128, 128
      %69 = vsyncadd [#allocation4], %s68
      %s70 = sshll.u32 [#allocation7], 4
      %s71 = int_to_ptr.vmem [resolvable:$true] %s70
      %76 = dma.vmem_to_hbm [thread:$0]  %s71, 128, %s2, [#allocation4], 64, 64, 4
    $region21: #{tpu_custom_call.1} parent=1 // pred_fallthru
      _
    // Predicated region
    $region22: #{tpu_custom_call.1} parent=1 // pred_check
      _
    $region23: #{tpu_custom_call.1} parent=1 // pred_check_branch
      %78 = sbr.rel (0) target = $region25
    $region24: #{tpu_custom_call.1} parent=1 // pred_region
      %79 = dma.done [#allocation4], 128
    $region25: #{tpu_custom_call.1} parent=1 // pred_fallthru
      _
    %80 = vsyncpa [#allocation3], 1
    %81 = vsyncpa [#allocation6], 1
    %82 = vsyncpa [#allocation4], 1

</llo_original>
